<compile_context>
chip_gen: v7x
topology: tpu7x:2x2x1
jax: 0.10.0
libtpu: 0.0.40
codegen_flags: <defaults>
</compile_context>

<pallas_src>
import jax
import jax.numpy as jnp
from jax.experimental import pallas as pl
from jax.experimental.pallas import tpu as pltpu


_TARGET_BLOCK_BYTES = 2 << 20     # ~2 MiB per block -> ~8 MiB pipeline footprint
_ROW_TILE_MAX = 1024              # rows per block cap (32-multiple)
_LANE_TILE_CAP = 16384            # lane-tile sanity cap (128-multiple)


def _chomp_copy_kernel(x_ref, o_ref):
    # Straight tile copy.  The slice is a no-op on the lane-aligned fast path
    # (input/output L blocks are equal); on the tiny-L fallback it trims the
    # chomped tail inside VMEM.
    o_ref[...] = x_ref[:, : o_ref.shape[-1]]


def chomp1d(x: jax.Array, chomp_size: int) -> jax.Array:
    """x: (N, C, L)  ->  (N, C, L - chomp_size), same dtype (PyTorch Chomp1d)."""
    n, c, l = x.shape
    assert 0 <= chomp_size < l, "need 0 <= chomp_size < L"
    if chomp_size == 0:
        # Exact PyTorch semantics: x[:, :, :-0] is an empty slice.
        return x[:, :, :0]
    l_out = l - chomp_size

    rows = n * c
    itemsize = jnp.dtype(x.dtype).itemsize
    x2 = x.reshape(rows, l)                    # free: (N, C, L) is contiguous

    # ---- row tile over flattened (N*C): full dim when small, else 32-mult ----
    l_guess = min(128 * pl.cdiv(l_out, 128), 2048) if l_out >= 128 else l
    if rows <= _ROW_TILE_MAX:
        row_tile = rows                        # full array dim -> always legal
    else:
        budget_rows = max(32, _TARGET_BLOCK_BYTES // (l_guess * itemsize))
        row_tile = int(min(_ROW_TILE_MAX, (budget_rows // 32) * 32))

    if l_out >= 128:
        # Fast path: lane-dense 128-multiple L tiles, balanced over l_out so
        # the final tile is not a sliver.
        lane_budget = _TARGET_BLOCK_BYTES // (row_tile * itemsize)
        l_tile_max = int(min(_LANE_TILE_CAP, max(128, (lane_budget // 128) * 128)))
        l_tile_max = min(l_tile_max, 128 * pl.cdiv(l_out, 128))
        n_l = pl.cdiv(l_out, l_tile_max)
        l_tile = 128 * pl.cdiv(pl.cdiv(l_out, 128), n_l)   # balanced split
        n_l = pl.cdiv(l_out, l_tile)
        in_l_block = out_l_block = l_tile
    else:
        # Tiny-sequence fallback: full-L input block, slice in-kernel.
        in_l_block, out_l_block, n_l = l, l_out, 1

    grid = (pl.cdiv(rows, row_tile), n_l)

    out2 = pl.pallas_call(
        _chomp_copy_kernel,
        out_shape=jax.ShapeDtypeStruct((rows, l_out), x.dtype),
        grid=grid,
        in_specs=[pl.BlockSpec((row_tile, in_l_block), lambda ri, li: (ri, li))],
        out_specs=pl.BlockSpec((row_tile, out_l_block), lambda ri, li: (ri, li)),
        compiler_params=pltpu.CompilerParams(
            # No reduction axis: every (ri, li) writes a disjoint output block,
            # so both axes can be sharded across v7x's two TensorCores.
            dimension_semantics=("parallel", "parallel"),
            vmem_limit_bytes=32 << 20),
        cost_estimate=pl.CostEstimate(
            flops=0, transcendentals=0,
            bytes_accessed=2 * rows * l_out * itemsize),
    )(x2)
    return out2.reshape(n, c, l_out)


if __name__ == "__main__":
    key = jax.random.PRNGKey(0)

    # 1) Small shape matching typical module use (tiny-L fallback path).
    N, C, L, chomp = 2, 4, 16, 3
    x = jax.random.normal(key, (N, C, L), dtype=jnp.float32)
    y = jax.block_until_ready(chomp1d(x, chomp))
    assert y.shape == (N, C, L - chomp)
    assert jnp.array_equal(y, x[:, :, :-chomp])

    # 2) Lane-aligned fast path, few rows, non-dividing L tail.
    k2 = jax.random.PRNGKey(0)
    N2, C2, L2, chomp2 = 2, 8, 300, 5          # l_out = 295 -> one 384-wide tile
    x2 = jax.random.normal(k2, (N2, C2, L2), dtype=jnp.float32)
    y2 = jax.block_until_ready(chomp1d(x2, chomp2))
    assert y2.shape == (N2, C2, L2 - chomp2)
    assert jnp.array_equal(y2, x2[:, :, :-chomp2])

    # 3) Multi-L-tile balanced split (rows=512, l_out=1691 -> 2 x 896 tiles).
    k3 = jax.random.PRNGKey(0)
    N3, C3, L3, chomp3 = 2, 256, 1700, 9
    x3 = jax.random.normal(k3, (N3, C3, L3), dtype=jnp.float32)
    y3 = jax.block_until_ready(chomp1d(x3, chomp3))
    assert y3.shape == (N3, C3, L3 - chomp3)
    assert jnp.array_equal(y3, x3[:, :, :-chomp3])

    # 4) rows > 1024 -> 32-multiple row tiles with a masked row tail.
    k4 = jax.random.PRNGKey(0)
    N4, C4, L4, chomp4 = 3, 400, 1000, 10      # rows = 1200
    x4 = jax.random.normal(k4, (N4, C4, L4), dtype=jnp.float32)
    y4 = jax.block_until_ready(chomp1d(x4, chomp4))
    assert y4.shape == (N4, C4, L4 - chomp4)
    assert jnp.array_equal(y4, x4[:, :, :-chomp4])

    print("KERNEL_OK")
</pallas_src>

<mosaic_0001>
module attributes {stable_mosaic.version = 11 : i64} {
  func.func @_chomp_copy_kernel(%arg0: i32, %arg1: i32, %arg2: memref<8x16xf32, #tpu.memory_space<vmem>>, %arg3: memref<8x13xf32, #tpu.memory_space<vmem>>) attributes {dimension_semantics = [#tpu.dimension_semantics<parallel>, #tpu.dimension_semantics<parallel>], iteration_bounds = array<i64: 1, 1>, scalar_prefetch = 0 : i64, scratch_operands = 0 : i64, tpu.core_type = #tpu.core_type<tc>, window_params = [{transform_indices = @transform_0, window_bounds = array<i64: 8, 16>}, {transform_indices = @transform_1, window_bounds = array<i64: 8, 13>}]} {
    %c0 = arith.constant 0 : index
    %c0_0 = arith.constant 0 : index
    %0 = vector.load %arg2[%c0, %c0_0] : memref<8x16xf32, #tpu.memory_space<vmem>>, vector<8x13xf32>
    %c0_1 = arith.constant 0 : index
    %c0_2 = arith.constant 0 : index
    %1 = vector.load %arg3[%c0_1, %c0_2] : memref<8x13xf32, #tpu.memory_space<vmem>>, vector<8x13xf32>
    tpu.vector_store %arg3[%c0_1, %c0_2], %0 {strides = array<i32>} : memref<8x13xf32, #tpu.memory_space<vmem>>, vector<8x13xf32>,
    return
  }
  func.func @transform_0(%arg0: i32, %arg1: i32) -> (i32, i32) {
    %c0_i32 = arith.constant 0 : i32
    return %arg0, %arg1 : i32, i32
  }
  func.func @transform_1(%arg0: i32, %arg1: i32) -> (i32, i32) {
    %c0_i32 = arith.constant 0 : i32
    return %arg0, %arg1 : i32, i32
  }
}

</mosaic_0001>

<llo_original>
// kernel: tpu_custom_call.1
$region0: #{tpu_custom_call.1}
  #allocation0 [shape = 'u32[]', space=smem, size = 0x4, offset = 0x4, fixed_abs, tag = 'smem constant byte address 0x4 - core index']
  #allocation1 [shape = 'u32[144,128]{1,0:T(1,128)}', space=vmem, size = 0x12000, scoped, tag = 'internal scratch']
  %s0 = inlined_call_operand.hbm [shape: f32[8,16], index: 0, kind: input, shape index: {}]
  %s1 = inlined_call_operand.hbm [shape: f32[8,13], index: 1, kind: output, shape index: {}]
  %s2 = sld [smem:[#allocation0]]
  $region18: #{tpu_custom_call.1} parent=0
    _
  %s4 = ssub.s32 1, %s2
  %s5 = scalar_select 0, %s4, %s2
  $region1: #{tpu_custom_call.1} parent=0
    #allocation2 [shape = 'u8[4096]{0}', space=vmem, size = 0x1000, scoped, tag = 'input window, operand 0, single buffered']
    #allocation3 [shape = 's32[1]{0}', space=sflag, size = 0x4, scoped, tag = 'scoped memory for tpu_custom_call.1']
    #allocation4 [shape = 's32[1]{0}', space=sflag, size = 0x4, scoped, tag = 'scoped memory for tpu_custom_call.1']
    #allocation5 [shape = 'u8[4096]{0}', space=vmem, size = 0x1000, scoped, tag = 'output window, operand 0, single buffered']
    %6 = vsyncpa [#allocation3], 0
    %7 = vsyncpa [#allocation4], 0
    // Predicated region
    $region2: #{tpu_custom_call.1} parent=1 // pred_check
      _
    $region3: #{tpu_custom_call.1} parent=1 // pred_check_branch
      %9 = sbr.rel (0) target = $region5
    $region4: #{tpu_custom_call.1} parent=1 // pred_region
      %s11 = ssub.s32 128, 128
      %12 = vsyncadd [#allocation3], %s11
      %s14 = sshll.u32 [#allocation2], 4
      %s15 = int_to_ptr.vmem [resolvable:$true] %s14
      %17 = dma.hbm_to_vmem [thread:$0]  %s0, 128, %s15, [#allocation3]
    $region5: #{tpu_custom_call.1} parent=1 // pred_fallthru
      _
    // Predicated region
    $region6: #{tpu_custom_call.1} parent=1 // pred_check
      _
    $region7: #{tpu_custom_call.1} parent=1 // pred_check_branch
      %19 = sbr.rel (0) target = $region9
    $region8: #{tpu_custom_call.1} parent=1 // pred_region
      %20 = dma.done [#allocation3], 128
    $region9: #{tpu_custom_call.1} parent=1 // pred_fallthru
      _
    %v21 = vld [vmem:[#allocation2] sm:$0xff]
    %vm22 = vcmask 105472
    %23 = vst.msk [vmem:[#allocation5] sm:$0xff] %vm22, %v21
    // Predicated region
    $region10: #{tpu_custom_call.1} parent=1 // pred_check
      _
    $region11: #{tpu_custom_call.1} parent=1 // pred_check_branch
      %25 = sbr.rel (0) target = $region13
    $region12: #{tpu_custom_call.1} parent=1 // pred_region
      %s27 = ssub.s32 128, 128
      %28 = vsyncadd [#allocation4], %s27
      %s30 = sshll.u32 [#allocation5], 4
      %s31 = int_to_ptr.vmem [resolvable:$true] %s30
      %33 = dma.vmem_to_hbm [thread:$0]  %s31, 128, %s1, [#allocation4]
    $region13: #{tpu_custom_call.1} parent=1 // pred_fallthru
      _
    // Predicated region
    $region14: #{tpu_custom_call.1} parent=1 // pred_check
      _
    $region15: #{tpu_custom_call.1} parent=1 // pred_check_branch
      %35 = sbr.rel (0) target = $region17
    $region16: #{tpu_custom_call.1} parent=1 // pred_region
      %36 = dma.done [#allocation4], 128
    $region17: #{tpu_custom_call.1} parent=1 // pred_fallthru
      _
    %37 = vsyncpa [#allocation3], 1
    %38 = vsyncpa [#allocation4], 1

</llo_original>
